<compile_context>
chip_gen: v6e
topology: v6e:2x2x1
jax: 0.10.0
libtpu: 0.0.40
codegen_flags: <defaults>
</compile_context>

<pallas_src>
import functools

import jax
import jax.numpy as jnp
from jax import lax
from jax.experimental import pallas as pl
from jax.experimental.pallas import tpu as pltpu


# ----------------------------- helpers ------------------------------------ #

def _round_up(x, m):
    return ((x + m - 1) // m) * m


def _pick_tile(dim, candidates=(512, 256, 128)):
    """Pick the tile from `candidates` minimizing padding (prefer larger on ties)."""
    best_t, best_pad = None, None
    for t in candidates:
        pad = _round_up(dim, t) - dim
        if best_pad is None or pad < best_pad or (pad == best_pad and t > best_t):
            best_t, best_pad = t, pad
    return best_t


# ----------------------------- Pallas kernel ------------------------------ #

def linear_kernel(x_ref, w_ref, b_ref, o_ref, acc_ref, *, precision):
    """One (tm, tn) output tile of y = x @ W^T + b, accumulated over K blocks.

    x_ref  : (tm, tk)  row tile of the input
    w_ref  : (tn, tk)  weight tile in NATIVE (out, hidden) layout
    b_ref  : (1,  tn)  bias slice
    o_ref  : (tm, tn)  output tile
    acc_ref: (tm, tn)  f32 accumulator scratch (resident across the K sweep)
    """
    k = pl.program_id(2)

    @pl.when(k == 0)
    def _():
        acc_ref[...] = jnp.zeros_like(acc_ref)

    acc_ref[...] += lax.dot_general(
        x_ref[...], w_ref[...],
        dimension_numbers=(((1,), (1,)), ((), ())),   # contract both K axes
        preferred_element_type=jnp.float32,
        precision=precision)

    @pl.when(k == pl.num_programs(2) - 1)
    def _():
        o_ref[...] = (acc_ref[...] + b_ref[...]).astype(o_ref.dtype)


# ------------------------------- wrapper ----------------------------------- #

def classifier_head_pallas(x, weight, bias, *, use_bf16=False):
    """nn.Linear forward. x: (..., K); weight: (N, K); bias: (N,)."""
    *lead, K = x.shape
    N = weight.shape[0]

    M = 1
    for d in lead:
        M *= d
    x2 = x.reshape(M, K)
    out_dtype = x.dtype

    if use_bf16:
        x2 = x2.astype(jnp.bfloat16)
        weight = weight.astype(jnp.bfloat16)

    # f32 inputs: full-f32 MXU passes to match PyTorch f32 Linear numerics.
    precision = (lax.Precision.HIGHEST if x2.dtype == jnp.float32
                 else lax.Precision.DEFAULT)

    # ---- tile selection (padding-aware, VMEM-bounded) ----
    K_BLOCK_MAX = 2048
    if K <= K_BLOCK_MAX:
        tk, Kp = K, K                       # single K step, full-dim block, no K pad
    else:
        tk = 512
        Kp = _round_up(K, tk)

    tm = M if M < 128 else _pick_tile(M)
    Mp = _round_up(M, tm)
    tn = N if N < 128 else _pick_tile(N)
    Np = _round_up(N, tn)

    # ---- pad only when required ----
    if (Mp, Kp) != (M, K):
        x_p = jnp.zeros((Mp, Kp), x2.dtype).at[:M, :K].set(x2)
    else:
        x_p = x2
    if (Np, Kp) != (N, K):
        # TODO(synk): hoist this (rare) pad to parameter-init time for repeated calls.
        w_p = jnp.zeros((Np, Kp), weight.dtype).at[:N, :K].set(weight)
    else:
        w_p = weight
    b2 = bias.reshape(1, N)
    b_p = jnp.zeros((1, Np), bias.dtype).at[:, :N].set(b2) if Np != N else b2

    gm, gn, gk = Mp // tm, Np // tn, Kp // tk

    # Loop order: output axis of the DOMINANT operand outermost, so with a single
    # K step its HBM blocks are streamed exactly once over the inner sweep.
    weight_major = Np >= Mp           # weight bytes (Np*Kp) >= activation bytes (Mp*Kp)
    if weight_major:
        grid = (gn, gm, gk)
        x_map = lambda j, i, k: (i, k)
        w_map = lambda j, i, k: (j, k)
        b_map = lambda j, i, k: (0, j)
        o_map = lambda j, i, k: (i, j)
    else:
        grid = (gm, gn, gk)
        x_map = lambda i, j, k: (i, k)
        w_map = lambda i, j, k: (j, k)
        b_map = lambda i, j, k: (0, j)
        o_map = lambda i, j, k: (i, j)

    in_itemsize = x_p.dtype.itemsize
    out_itemsize = jnp.dtype(out_dtype).itemsize

    # Double-buffered input tiles + output tiles + f32 accumulator, with headroom;
    # capped below the v7x 64 MiB per-TensorCore VMEM.
    blk_bytes = (2 * (tm * tk + tn * tk + tn) * in_itemsize
                 + 2 * tm * tn * out_itemsize
                 + tm * tn * 4)
    vmem_limit = int(min(max(2 * blk_bytes, 32 * 1024 * 1024), 48 * 1024 * 1024))

    cost = pl.CostEstimate(
        flops=2 * Mp * Kp * Np,
        transcendentals=0,
        bytes_accessed=(Mp * Kp + Np * Kp + Np) * in_itemsize + Mp * Np * out_itemsize,
    )

    kernel = functools.partial(linear_kernel, precision=precision)

    y_p = pl.pallas_call(
        kernel,
        out_shape=jax.ShapeDtypeStruct((Mp, Np), out_dtype),
        grid_spec=pltpu.PrefetchScalarGridSpec(
            num_scalar_prefetch=0,
            grid=grid,
            in_specs=[
                pl.BlockSpec((tm, tk), x_map),
                pl.BlockSpec((tn, tk), w_map),
                pl.BlockSpec((1, tn), b_map),
            ],
            out_specs=pl.BlockSpec((tm, tn), o_map),
            scratch_shapes=[pltpu.VMEM((tm, tn), jnp.float32)],
        ),
        compiler_params=pltpu.CompilerParams(
            dimension_semantics=("parallel", "parallel", "arbitrary"),
            vmem_limit_bytes=vmem_limit),
        cost_estimate=cost,
    )(x_p, w_p, b_p)

    # Skip the slice (an extra HBM pass on the logits) when nothing was padded.
    y = y_p if (Mp == M and Np == N) else y_p[:M, :N]
    return y.reshape(*lead, N)


# ------------------------------ JAX reference ------------------------------ #

def classifier_head_ref(x, weight, bias):
    return jnp.einsum('...k,nk->...n', x, weight,
                      precision=lax.Precision.HIGHEST) + bias


# ----------------------------------- main ---------------------------------- #

if __name__ == "__main__":
    key = jax.random.PRNGKey(0)
    kx, kw, kb = jax.random.split(key, 3)

    # Small shapes consistent with the module: ClassifierHead(dim_hidden=32, out=8)
    B, dim_hidden, n_out = 2, 32, 8

    x = jax.random.normal(kx, (B, dim_hidden), jnp.float32)
    # init_weights(): weight, bias ~ N(0, 0.01)
    weight = 0.01 * jax.random.normal(kw, (n_out, dim_hidden), jnp.float32)
    bias = 0.01 * jax.random.normal(kb, (n_out,), jnp.float32)

    out = classifier_head_pallas(x, weight, bias)
    out = jax.block_until_ready(out)

    ref = jax.block_until_ready(classifier_head_ref(x, weight, bias))

    assert out.shape == (B, n_out), out.shape
    assert jnp.allclose(out, ref, atol=1e-5, rtol=1e-5), \
        float(jnp.max(jnp.abs(out - ref)))

    print("KERNEL_OK")
</pallas_src>

<mosaic_0001>
module attributes {stable_mosaic.version = 11 : i64} {
  func.func @linear_kernel(%arg0: i32, %arg1: i32, %arg2: i32, %arg3: memref<2x32xf32, #tpu.memory_space<vmem>>, %arg4: memref<8x32xf32, #tpu.memory_space<vmem>>, %arg5: memref<1x8xf32, #tpu.memory_space<vmem>>, %arg6: memref<2x8xf32, #tpu.memory_space<vmem>>, %arg7: memref<2x8xf32, #tpu.memory_space<vmem>>) attributes {dimension_semantics = [#tpu.dimension_semantics<parallel>, #tpu.dimension_semantics<parallel>, #tpu.dimension_semantics<arbitrary>], iteration_bounds = array<i64: 1, 1, 1>, scalar_prefetch = 0 : i64, scratch_operands = 1 : i64, tpu.core_type = #tpu.core_type<tc>, window_params = [{transform_indices = @transform_0, window_bounds = array<i64: 2, 32>}, {transform_indices = @transform_1, window_bounds = array<i64: 8, 32>}, {transform_indices = @transform_2, window_bounds = array<i64: 1, 8>}, {transform_indices = @transform_3, window_bounds = array<i64: 2, 8>}]} {
    %c0_i32 = arith.constant 0 : i32
    %0 = arith.cmpi eq, %arg2, %c0_i32 : i32
    %1 = arith.extui %0 : i1 to i32
    %c0_i32_0 = arith.constant 0 : i32
    %2 = arith.cmpi ne, %1, %c0_i32_0 : i32
    scf.if %2 {
      %cst_10 = arith.constant 0.000000e+00 : f32
      %12 = vector.broadcast %cst_10 : f32 to vector<2x8xf32>
      %c0_11 = arith.constant 0 : index
      %c0_12 = arith.constant 0 : index
      %13 = vector.load %arg7[%c0_11, %c0_12] : memref<2x8xf32, #tpu.memory_space<vmem>>, vector<2x8xf32>
      tpu.vector_store %arg7[%c0_11, %c0_12], %12 {strides = array<i32>} : memref<2x8xf32, #tpu.memory_space<vmem>>, vector<2x8xf32>,
    } else {
    }
    %c0 = arith.constant 0 : index
    %c0_1 = arith.constant 0 : index
    %3 = vector.load %arg7[%c0, %c0_1] : memref<2x8xf32, #tpu.memory_space<vmem>>, vector<2x8xf32>
    %c0_2 = arith.constant 0 : index
    %c0_3 = arith.constant 0 : index
    %4 = vector.load %arg3[%c0_2, %c0_3] : memref<2x32xf32, #tpu.memory_space<vmem>>, vector<2x32xf32>
    %c0_4 = arith.constant 0 : index
    %c0_5 = arith.constant 0 : index
    %5 = vector.load %arg4[%c0_4, %c0_5] : memref<8x32xf32, #tpu.memory_space<vmem>>, vector<8x32xf32>
    %cst = arith.constant dense<0.000000e+00> : vector<2x8xf32>
    %6 = tpu.matmul %4, %5, %cst {dimension_numbers = #tpu.dot_dimension_numbers<[1], [1], [0], [0], [0, 0, 1, 0], [], []>, precision = #tpu.contract_precision<fp32>} : vector<2x32xf32>, vector<8x32xf32>, vector<2x8xf32> -> vector<2x8xf32>
    %7 = arith.addf %3, %6 : vector<2x8xf32>
    %c0_6 = arith.constant 0 : index
    %c0_7 = arith.constant 0 : index
    %8 = vector.load %arg7[%c0_6, %c0_7] : memref<2x8xf32, #tpu.memory_space<vmem>>, vector<2x8xf32>
    tpu.vector_store %arg7[%c0_6, %c0_7], %7 {strides = array<i32>} : memref<2x8xf32, #tpu.memory_space<vmem>>, vector<2x8xf32>,
    %c0_i32_8 = arith.constant 0 : i32
    %9 = arith.cmpi eq, %arg2, %c0_i32_8 : i32
    %10 = arith.extui %9 : i1 to i32
    %c0_i32_9 = arith.constant 0 : i32
    %11 = arith.cmpi ne, %10, %c0_i32_9 : i32
    scf.if %11 {
      %c0_10 = arith.constant 0 : index
      %c0_11 = arith.constant 0 : index
      %12 = vector.load %arg7[%c0_10, %c0_11] : memref<2x8xf32, #tpu.memory_space<vmem>>, vector<2x8xf32>
      %c0_12 = arith.constant 0 : index
      %c0_13 = arith.constant 0 : index
      %13 = vector.load %arg5[%c0_12, %c0_13] : memref<1x8xf32, #tpu.memory_space<vmem>>, vector<1x8xf32>
      %14 = vector.broadcast %13 : vector<1x8xf32> to vector<2x8xf32>
      %15 = arith.addf %12, %14 : vector<2x8xf32>
      %c0_14 = arith.constant 0 : index
      %c0_15 = arith.constant 0 : index
      %16 = vector.load %arg6[%c0_14, %c0_15] : memref<2x8xf32, #tpu.memory_space<vmem>>, vector<2x8xf32>
      tpu.vector_store %arg6[%c0_14, %c0_15], %15 {strides = array<i32>} : memref<2x8xf32, #tpu.memory_space<vmem>>, vector<2x8xf32>,
    } else {
    }
    return
  }
  func.func @transform_0(%arg0: i32, %arg1: i32, %arg2: i32) -> (i32, i32) {
    %c0_i32 = arith.constant 0 : i32
    return %arg1, %arg2 : i32, i32
  }
  func.func @transform_1(%arg0: i32, %arg1: i32, %arg2: i32) -> (i32, i32) {
    %c0_i32 = arith.constant 0 : i32
    return %arg0, %arg2 : i32, i32
  }
  func.func @transform_2(%arg0: i32, %arg1: i32, %arg2: i32) -> (i32, i32) {
    %c0_i32 = arith.constant 0 : i32
    %c0_i32_0 = arith.constant 0 : i32
    return %c0_i32, %arg0 : i32, i32
  }
  func.func @transform_3(%arg0: i32, %arg1: i32, %arg2: i32) -> (i32, i32) {
    %c0_i32 = arith.constant 0 : i32
    return %arg1, %arg0 : i32, i32
  }
}

</mosaic_0001>

<llo_original>
// kernel: tpu_custom_call.1
$region0: #{tpu_custom_call.1}
  #allocation0 [shape = 'u32[]', space=smem, size = 0x4, offset = 0x4, fixed_abs, tag = 'smem constant byte address 0x4 - core index']
  #allocation1 [shape = 'u32[144,128]{1,0:T(1,128)}', space=vmem, size = 0x12000, scoped, tag = 'internal scratch']
  #allocation2 [shape = 'f32[2,8]{1,0:T(2,128)}', space=vmem, size = 0x400, scoped, tag = 'scratch operand']
  %s0 = inlined_call_operand.hbm [shape: f32[2,32], index: 0, kind: input, shape index: {}]
  %s1 = inlined_call_operand.hbm [shape: f32[8,32], index: 1, kind: input, shape index: {}]
  %s2 = inlined_call_operand.vmem [shape: f32[1,8], index: 2, kind: input, shape index: {}]
  %s3 = inlined_call_operand.hbm [shape: f32[2,8], index: 3, kind: output, shape index: {}]
  %s4 = sld [smem:[#allocation0]]
  $region38: #{tpu_custom_call.1} parent=0
    _
  %s6 = ssub.s32 1, %s4
  %s7 = scalar_select 0, %s6, %s4
  $region1: #{tpu_custom_call.1} parent=0
    #allocation3 [shape = 'u8[1024]{0}', space=vmem, size = 0x400, scoped, tag = 'input window, operand 0, single buffered']
    #allocation4 [shape = 's32[1]{0}', space=sflag, size = 0x4, scoped, tag = 'scoped memory for tpu_custom_call.1']
    #allocation5 [shape = 's32[1]{0}', space=sflag, size = 0x4, scoped, tag = 'scoped memory for tpu_custom_call.1']
    #allocation6 [shape = 'u8[4096]{0}', space=vmem, size = 0x1000, scoped, tag = 'input window, operand 1, single buffered']
    #allocation7 [shape = 's32[1]{0}', space=sflag, size = 0x4, scoped, tag = 'scoped memory for tpu_custom_call.1']
    #allocation8 [shape = 'u8[1024]{0}', space=vmem, size = 0x400, scoped, tag = 'output window, operand 0, single buffered']
    %8 = vsyncpa [#allocation4], 0
    %9 = vsyncpa [#allocation7], 0
    %10 = vsyncpa [#allocation5], 0
    // Predicated region
    $region2: #{tpu_custom_call.1} parent=1 // pred_check
      _
    $region3: #{tpu_custom_call.1} parent=1 // pred_check_branch
      %12 = sbr.rel (0) target = $region5
    $region4: #{tpu_custom_call.1} parent=1 // pred_region
      %s14 = ssub.s32 32, 32
      %15 = vsyncadd [#allocation4], %s14
      %s17 = sshll.u32 [#allocation3], 4
      %s18 = int_to_ptr.vmem [resolvable:$true] %s17
      %20 = dma.hbm_to_vmem [thread:$0]  %s0, 32, %s18, [#allocation4]
    $region5: #{tpu_custom_call.1} parent=1 // pred_fallthru
      _
    // Predicated region
    $region6: #{tpu_custom_call.1} parent=1 // pred_check
      _
    $region7: #{tpu_custom_call.1} parent=1 // pred_check_branch
      %22 = sbr.rel (0) target = $region9
    $region8: #{tpu_custom_call.1} parent=1 // pred_region
      %s24 = ssub.s32 128, 128
      %25 = vsyncadd [#allocation7], %s24
      %s27 = sshll.u32 [#allocation6], 4
      %s28 = int_to_ptr.vmem [resolvable:$true] %s27
      %30 = dma.hbm_to_vmem [thread:$0]  %s1, 128, %s28, [#allocation7]
    $region9: #{tpu_custom_call.1} parent=1 // pred_fallthru
      _
    // Predicated region
    $region10: #{tpu_custom_call.1} parent=1 // pred_check
      _
    $region11: #{tpu_custom_call.1} parent=1 // pred_check_branch
      %32 = sbr.rel (0) target = $region13
    $region12: #{tpu_custom_call.1} parent=1 // pred_region
      _
    $region13: #{tpu_custom_call.1} parent=1 // pred_fallthru
      _
    // Predicated region
    $region14: #{tpu_custom_call.1} parent=1 // pred_check
      _
    $region15: #{tpu_custom_call.1} parent=1 // pred_check_branch
      %34 = sbr.rel (0) target = $region17
    $region16: #{tpu_custom_call.1} parent=1 // pred_region
      %35 = dma.done [#allocation4], 32
    $region17: #{tpu_custom_call.1} parent=1 // pred_fallthru
      _
    // Predicated region
    $region18: #{tpu_custom_call.1} parent=1 // pred_check
      _
    $region19: #{tpu_custom_call.1} parent=1 // pred_check_branch
      %37 = sbr.rel (0) target = $region21
    $region20: #{tpu_custom_call.1} parent=1 // pred_region
      %38 = dma.done [#allocation7], 128
    $region21: #{tpu_custom_call.1} parent=1 // pred_fallthru
      _
    %p39 = scmp.eq.s32.totalorder 0, 0
    // Predicated region
    $region22: #{tpu_custom_call.1} parent=1 // pred_check
      %p40 = pneg %p39
    $region23: #{tpu_custom_call.1} parent=1 // pred_check_branch
      %42 = sbr.rel (%p40) target = $region25
    $region24: #{tpu_custom_call.1} parent=1 // pred_region
      %vm43 = vcmask 58368
      %44 = vst.msk [vmem:[#allocation2] sm:$0x3] %vm43, 0.0
    $region25: #{tpu_custom_call.1} parent=1 // pred_fallthru
      _
    %v45 = vld [vmem:[#allocation2] sm:$0x3]
    %v46 = vld [vmem:[#allocation3] sm:$0x3]
    %v47 = vld [vmem:[#allocation6] sm:$0xff]
    %vm48 = vcmask 261120
    %v50 = vsel %vm48, %v46, 0
    %v53 = vsel %vm48, %v47, 0
    %55 = vmatprep.subr.mxu0 0.0
    %56 = vmatpush1.xpose.msra.mxu0 0.0
    %57 = vmatprep.subr.mxu0 0.0
    %58 = vmatpush1.xpose.msra.mxu0 0.0
    %59 = vmatprep.subr.mxu0 0.0
    %60 = vmatpush1.xpose.msra.mxu0 0.0
    %61 = vmatprep.subr.mxu0 0.0
    %62 = vmatpush1.xpose.msra.mxu0 0.0
    %63 = vmatprep.subr.mxu0 0.0
    %64 = vmatpush1.xpose.msra.mxu0 0.0
    %65 = vmatprep.subr.mxu0 0.0
    %66 = vmatpush1.xpose.msra.mxu0 0.0
    %67 = vmatprep.subr.mxu0 0.0
    %68 = vmatpush1.xpose.msra.mxu0 0.0
    %69 = vmatprep.subr.mxu0 0.0
    %70 = vmatpush1.xpose.msra.mxu0 0.0
    %71 = vmatprep.subr.mxu0 0.0
    %72 = vmatpush1.xpose.msra.mxu0 0.0
    %73 = vmatprep.subr.mxu0 0.0
    %74 = vmatpush1.xpose.msra.mxu0 0.0
    %75 = vmatprep.subr.mxu0 0.0
    %76 = vmatpush1.xpose.msra.mxu0 0.0
    %77 = vmatprep.subr.mxu0 0.0
    %78 = vmatpush1.xpose.msra.mxu0 0.0
    %79 = vmatprep.subr.mxu0 0.0
    %80 = vmatpush1.xpose.msra.mxu0 0.0
    %81 = vmatprep.subr.mxu0 0.0
    %82 = vmatpush1.xpose.msra.mxu0 0.0
    %83 = vmatprep.subr.mxu0 0.0
    %84 = vmatpush1.xpose.msra.mxu0 0.0
    %85 = vmatprep.subr.mxu0 0.0
    %v86 = vand.u32 %v53, 4294901760
    %87 = vmatpush1.xpose.msra.mxu0 %v86
    %88 = vmatprep.subr.mxu0 0.0
    %89 = vmatpush2.xpose.msra.mxu0 0.0
    %90 = vmatprep.subr.mxu0 0.0
    %91 = vmatpush2.xpose.msra.mxu0 0.0
    %92 = vmatprep.subr.mxu0 0.0
    %93 = vmatpush2.xpose.msra.mxu0 0.0
    %94 = vmatprep.subr.mxu0 0.0
    %95 = vmatpush2.xpose.msra.mxu0 0.0
    %96 = vmatprep.subr.mxu0 0.0
    %97 = vmatpush2.xpose.msra.mxu0 0.0
    %98 = vmatprep.subr.mxu0 0.0
    %99 = vmatpush2.xpose.msra.mxu0 0.0
    %100 = vmatprep.subr.mxu0 0.0
    %101 = vmatpush2.xpose.msra.mxu0 0.0
    %102 = vmatprep.subr.mxu0 0.0
    %103 = vmatpush2.xpose.msra.mxu0 0.0
    %104 = vmatprep.subr.mxu0 0.0
    %105 = vmatpush2.xpose.msra.mxu0 0.0
    %106 = vmatprep.subr.mxu0 0.0
    %107 = vmatpush2.xpose.msra.mxu0 0.0
    %108 = vmatprep.subr.mxu0 0.0
    %109 = vmatpush2.xpose.msra.mxu0 0.0
    %110 = vmatprep.subr.mxu0 0.0
    %111 = vmatpush2.xpose.msra.mxu0 0.0
    %112 = vmatprep.subr.mxu0 0.0
    %113 = vmatpush2.xpose.msra.mxu0 0.0
    %114 = vmatprep.subr.mxu0 0.0
    %115 = vmatpush2.xpose.msra.mxu0 0.0
    %116 = vmatprep.subr.mxu0 0.0
    %117 = vmatpush2.xpose.msra.mxu0 0.0
    %118 = vmatprep.subr.mxu0 0.0
    %119 = vmatpush2.xpose.msra.mxu0 0.0
    %120 = vmatprep.mubr.f32.mxu0 0.0
    %v121 = vand.u32 %v50, 4294901760
    %v122 = vsub.f32 %v50, %v121
    %v123 = vand.u32 %v122, 4294901760
    %v124 = vsub.f32 %v122, %v123
    %v125 = vand.u32 %v124, 4294901760
    %126 = vmatmul.mubr.f32.gmra.mxu0 %v125
    %v127 = vpop.f32.mrf.mxu0
    %v128 = vadd.f32 0.0, %v127
    %v129 = vpop.f32.mrf.mxu0
    %130 = vdwg.mxu0
    %131 = vmatprep.subr.mxu0 0.0
    %132 = vmatpush1.xpose.msra.mxu0 0.0
    %133 = vmatprep.subr.mxu0 0.0
    %134 = vmatpush1.xpose.msra.mxu0 0.0
    %135 = vmatprep.subr.mxu0 0.0
    %136 = vmatpush1.xpose.msra.mxu0 0.0
    %137 = vmatprep.subr.mxu0 0.0
    %138 = vmatpush1.xpose.msra.mxu0 0.0
    %139 = vmatprep.subr.mxu0 0.0
    %140 = vmatpush1.xpose.msra.mxu0 0.0
    %141 = vmatprep.subr.mxu0 0.0
    %142 = vmatpush1.xpose.msra.mxu0 0.0
    %143 = vmatprep.subr.mxu0 0.0
    %144 = vmatpush1.xpose.msra.mxu0 0.0
    %145 = vmatprep.subr.mxu0 0.0
    %146 = vmatpush1.xpose.msra.mxu0 0.0
    %147 = vmatprep.subr.mxu0 0.0
    %148 = vmatpush1.xpose.msra.mxu0 0.0
    %149 = vmatprep.subr.mxu0 0.0
    %150 = vmatpush1.xpose.msra.mxu0 0.0
    %151 = vmatprep.subr.mxu0 0.0
    %152 = vmatpush1.xpose.msra.mxu0 0.0
    %153 = vmatprep.subr.mxu0 0.0
    %154 = vmatpush1.xpose.msra.mxu0 0.0
    %155 = vmatprep.subr.mxu0 0.0
    %156 = vmatpush1.xpose.msra.mxu0 0.0
    %157 = vmatprep.subr.mxu0 0.0
    %158 = vmatpush1.xpose.msra.mxu0 0.0
    %159 = vmatprep.subr.mxu0 0.0
    %160 = vmatpush1.xpose.msra.mxu0 0.0
    %161 = vmatprep.subr.mxu0 0.0
    %v162 = vand.u32 %v53, 4294901760
    %v163 = vsub.f32 %v53, %v162
    %v164 = vand.u32 %v163, 4294901760
    %v165 = vsub.f32 %v163, %v164
    %v166 = vand.u32 %v165, 4294901760
    %167 = vmatpush1.xpose.msra.mxu0 %v166
    %168 = vmatprep.subr.mxu0 0.0
    %169 = vmatpush2.xpose.msra.mxu0 0.0
    %170 = vmatprep.subr.mxu0 0.0
    %171 = vmatpush2.xpose.msra.mxu0 0.0
    %172 = vmatprep.subr.mxu0 0.0
    %173 = vmatpush2.xpose.msra.mxu0 0.0
    %174 = vmatprep.subr.mxu0 0.0
    %175 = vmatpush2.xpose.msra.mxu0 0.0
    %176 = vmatprep.subr.mxu0 0.0
    %177 = vmatpush2.xpose.msra.mxu0 0.0
    %178 = vmatprep.subr.mxu0 0.0
    %179 = vmatpush2.xpose.msra.mxu0 0.0
    %180 = vmatprep.subr.mxu0 0.0
    %181 = vmatpush2.xpose.msra.mxu0 0.0
    %182 = vmatprep.subr.mxu0 0.0
    %183 = vmatpush2.xpose.msra.mxu0 0.0
    %184 = vmatprep.subr.mxu0 0.0
    %185 = vmatpush2.xpose.msra.mxu0 0.0
    %186 = vmatprep.subr.mxu0 0.0
    %187 = vmatpush2.xpose.msra.mxu0 0.0
    %188 = vmatprep.subr.mxu0 0.0
    %189 = vmatpush2.xpose.msra.mxu0 0.0
    %190 = vmatprep.subr.mxu0 0.0
    %191 = vmatpush2.xpose.msra.mxu0 0.0
    %192 = vmatprep.subr.mxu0 0.0
    %193 = vmatpush2.xpose.msra.mxu0 0.0
    %194 = vmatprep.subr.mxu0 0.0
    %195 = vmatpush2.xpose.msra.mxu0 0.0
    %196 = vmatprep.subr.mxu0 0.0
    %197 = vmatpush2.xpose.msra.mxu0 0.0
    %198 = vmatprep.subr.mxu0 0.0
    %199 = vmatpush2.xpose.msra.mxu0 0.0
    %200 = vmatprep.mubr.f32.mxu0 0.0
    %v201 = vand.u32 %v50, 4294901760
    %202 = vmatmul.mubr.f32.gmra.mxu0 %v201
    %v203 = vpop.f32.mrf.mxu0
    %v204 = vadd.f32 %v128, %v203
    %v205 = vpop.f32.mrf.mxu0
    %206 = vdwg.mxu0
    %207 = vmatprep.subr.mxu0 0.0
    %208 = vmatpush1.xpose.msra.mxu0 0.0
    %209 = vmatprep.subr.mxu0 0.0
    %210 = vmatpush1.xpose.msra.mxu0 0.0
    %211 = vmatprep.subr.mxu0 0.0
    %212 = vmatpush1.xpose.msra.mxu0 0.0
    %213 = vmatprep.subr.mxu0 0.0
    %214 = vmatpush1.xpose.msra.mxu0 0.0
    %215 = vmatprep.subr.mxu0 0.0
    %216 = vmatpush1.xpose.msra.mxu0 0.0
    %217 = vmatprep.subr.mxu0 0.0
    %218 = vmatpush1.xpose.msra.mxu0 0.0
    %219 = vmatprep.subr.mxu0 0.0
    %220 = vmatpush1.xpose.msra.mxu0 0.0
    %221 = vmatprep.subr.mxu0 0.0
    %222 = vmatpush1.xpose.msra.mxu0 0.0
    %223 = vmatprep.subr.mxu0 0.0
    %224 = vmatpush1.xpose.msra.mxu0 0.0
    %225 = vmatprep.subr.mxu0 0.0
    %226 = vmatpush1.xpose.msra.mxu0 0.0
    %227 = vmatprep.subr.mxu0 0.0
    %228 = vmatpush1.xpose.msra.mxu0 0.0
    %229 = vmatprep.subr.mxu0 0.0
    %230 = vmatpush1.xpose.msra.mxu0 0.0
    %231 = vmatprep.subr.mxu0 0.0
    %232 = vmatpush1.xpose.msra.mxu0 0.0
    %233 = vmatprep.subr.mxu0 0.0
    %234 = vmatpush1.xpose.msra.mxu0 0.0
    %235 = vmatprep.subr.mxu0 0.0
    %236 = vmatpush1.xpose.msra.mxu0 0.0
    %237 = vmatprep.subr.mxu0 0.0
    %v238 = vand.u32 %v53, 4294901760
    %v239 = vsub.f32 %v53, %v238
    %240 = vmatpush1.xpose.msra.mxu0 %v239
    %241 = vmatprep.subr.mxu0 0.0
    %242 = vmatpush2.xpose.msra.mxu0 0.0
    %243 = vmatprep.subr.mxu0 0.0
    %244 = vmatpush2.xpose.msra.mxu0 0.0
    %245 = vmatprep.subr.mxu0 0.0
    %246 = vmatpush2.xpose.msra.mxu0 0.0
    %247 = vmatprep.subr.mxu0 0.0
    %248 = vmatpush2.xpose.msra.mxu0 0.0
    %249 = vmatprep.subr.mxu0 0.0
    %250 = vmatpush2.xpose.msra.mxu0 0.0
    %251 = vmatprep.subr.mxu0 0.0
    %252 = vmatpush2.xpose.msra.mxu0 0.0
    %253 = vmatprep.subr.mxu0 0.0
    %254 = vmatpush2.xpose.msra.mxu0 0.0
    %255 = vmatprep.subr.mxu0 0.0
    %256 = vmatpush2.xpose.msra.mxu0 0.0
    %257 = vmatprep.subr.mxu0 0.0
    %258 = vmatpush2.xpose.msra.mxu0 0.0
    %259 = vmatprep.subr.mxu0 0.0
    %260 = vmatpush2.xpose.msra.mxu0 0.0
    %261 = vmatprep.subr.mxu0 0.0
    %262 = vmatpush2.xpose.msra.mxu0 0.0
    %263 = vmatprep.subr.mxu0 0.0
    %264 = vmatpush2.xpose.msra.mxu0 0.0
    %265 = vmatprep.subr.mxu0 0.0
    %266 = vmatpush2.xpose.msra.mxu0 0.0
    %267 = vmatprep.subr.mxu0 0.0
    %268 = vmatpush2.xpose.msra.mxu0 0.0
    %269 = vmatprep.subr.mxu0 0.0
    %270 = vmatpush2.xpose.msra.mxu0 0.0
    %271 = vmatprep.subr.mxu0 0.0
    %272 = vmatpush2.xpose.msra.mxu0 0.0
    %273 = vmatprep.mubr.f32.mxu0 0.0
    %v274 = vand.u32 %v50, 4294901760
    %v275 = vsub.f32 %v50, %v274
    %276 = vmatmul.mubr.f32.gmra.mxu0 %v275
    %v277 = vpop.f32.mrf.mxu0
    %v278 = vadd.f32 %v204, %v277
    %v279 = vpop.f32.mrf.mxu0
    %280 = vdwg.mxu0
    %281 = vmatprep.subr.mxu0 0.0
    %282 = vmatpush1.xpose.msra.mxu0 0.0
    %283 = vmatprep.subr.mxu0 0.0
    %284 = vmatpush1.xpose.msra.mxu0 0.0
    %285 = vmatprep.subr.mxu0 0.0
    %286 = vmatpush1.xpose.msra.mxu0 0.0
    %287 = vmatprep.subr.mxu0 0.0
    %288 = vmatpush1.xpose.msra.mxu0 0.0
    %289 = vmatprep.subr.mxu0 0.0
    %290 = vmatpush1.xpose.msra.mxu0 0.0
    %291 = vmatprep.subr.mxu0 0.0
    %292 = vmatpush1.xpose.msra.mxu0 0.0
    %293 = vmatprep.subr.mxu0 0.0
    %294 = vmatpush1.xpose.msra.mxu0 0.0
    %295 = vmatprep.subr.mxu0 0.0
    %296 = vmatpush1.xpose.msra.mxu0 0.0
    %297 = vmatprep.subr.mxu0 0.0
    %298 = vmatpush1.xpose.msra.mxu0 0.0
    %299 = vmatprep.subr.mxu0 0.0
    %300 = vmatpush1.xpose.msra.mxu0 0.0
    %301 = vmatprep.subr.mxu0 0.0
    %302 = vmatpush1.xpose.msra.mxu0 0.0
    %303 = vmatprep.subr.mxu0 0.0
    %304 = vmatpush1.xpose.msra.mxu0 0.0
    %305 = vmatprep.subr.mxu0 0.0
    %306 = vmatpush1.xpose.msra.mxu0 0.0
    %307 = vmatprep.subr.mxu0 0.0
    %308 = vmatpush1.xpose.msra.mxu0 0.0
    %309 = vmatprep.subr.mxu0 0.0
    %310 = vmatpush1.xpose.msra.mxu0 0.0
    %311 = vmatprep.subr.mxu0 0.0
    %v312 = vand.u32 %v53, 4294901760
    %313 = vmatpush1.xpose.msra.mxu0 %v312
    %314 = vmatprep.subr.mxu0 0.0
    %315 = vmatpush2.xpose.msra.mxu0 0.0
    %316 = vmatprep.subr.mxu0 0.0
    %317 = vmatpush2.xpose.msra.mxu0 0.0
    %318 = vmatprep.subr.mxu0 0.0
    %319 = vmatpush2.xpose.msra.mxu0 0.0
    %320 = vmatprep.subr.mxu0 0.0
    %321 = vmatpush2.xpose.msra.mxu0 0.0
    %322 = vmatprep.subr.mxu0 0.0
    %323 = vmatpush2.xpose.msra.mxu0 0.0
    %324 = vmatprep.subr.mxu0 0.0
    %325 = vmatpush2.xpose.msra.mxu0 0.0
    %326 = vmatprep.subr.mxu0 0.0
    %327 = vmatpush2.xpose.msra.mxu0 0.0
    %328 = vmatprep.subr.mxu0 0.0
    %329 = vmatpush2.xpose.msra.mxu0 0.0
    %330 = vmatprep.subr.mxu0 0.0
    %331 = vmatpush2.xpose.msra.mxu0 0.0
    %332 = vmatprep.subr.mxu0 0.0
    %333 = vmatpush2.xpose.msra.mxu0 0.0
    %334 = vmatprep.subr.mxu0 0.0
    %335 = vmatpush2.xpose.msra.mxu0 0.0
    %336 = vmatprep.subr.mxu0 0.0
    %337 = vmatpush2.xpose.msra.mxu0 0.0
    %338 = vmatprep.subr.mxu0 0.0
    %339 = vmatpush2.xpose.msra.mxu0 0.0
    %340 = vmatprep.subr.mxu0 0.0
    %341 = vmatpush2.xpose.msra.mxu0 0.0
    %342 = vmatprep.subr.mxu0 0.0
    %343 = vmatpush2.xpose.msra.mxu0 0.0
    %344 = vmatprep.subr.mxu0 0.0
    %345 = vmatpush2.xpose.msra.mxu0 0.0
    %346 = vmatprep.mubr.f32.mxu0 0.0
    %v347 = vand.u32 %v50, 4294901760
    %v348 = vsub.f32 %v50, %v347
    %v349 = vand.u32 %v348, 4294901760
    %350 = vmatmul.mubr.f32.gmra.mxu0 %v349
    %v351 = vpop.f32.mrf.mxu0
    %v352 = vadd.f32 %v278, %v351
    %v353 = vpop.f32.mrf.mxu0
    %354 = vdwg.mxu0
    %355 = vmatprep.subr.mxu0 0.0
    %356 = vmatpush1.xpose.msra.mxu0 0.0
    %357 = vmatprep.subr.mxu0 0.0
    %358 = vmatpush1.xpose.msra.mxu0 0.0
    %359 = vmatprep.subr.mxu0 0.0
    %360 = vmatpush1.xpose.msra.mxu0 0.0
    %361 = vmatprep.subr.mxu0 0.0
    %362 = vmatpush1.xpose.msra.mxu0 0.0
    %363 = vmatprep.subr.mxu0 0.0
    %364 = vmatpush1.xpose.msra.mxu0 0.0
    %365 = vmatprep.subr.mxu0 0.0
    %366 = vmatpush1.xpose.msra.mxu0 0.0
    %367 = vmatprep.subr.mxu0 0.0
    %368 = vmatpush1.xpose.msra.mxu0 0.0
    %369 = vmatprep.subr.mxu0 0.0
    %370 = vmatpush1.xpose.msra.mxu0 0.0
    %371 = vmatprep.subr.mxu0 0.0
    %372 = vmatpush1.xpose.msra.mxu0 0.0
    %373 = vmatprep.subr.mxu0 0.0
    %374 = vmatpush1.xpose.msra.mxu0 0.0
    %375 = vmatprep.subr.mxu0 0.0
    %376 = vmatpush1.xpose.msra.mxu0 0.0
    %377 = vmatprep.subr.mxu0 0.0
    %378 = vmatpush1.xpose.msra.mxu0 0.0
    %379 = vmatprep.subr.mxu0 0.0
    %380 = vmatpush1.xpose.msra.mxu0 0.0
    %381 = vmatprep.subr.mxu0 0.0
    %382 = vmatpush1.xpose.msra.mxu0 0.0
    %383 = vmatprep.subr.mxu0 0.0
    %384 = vmatpush1.xpose.msra.mxu0 0.0
    %385 = vmatprep.subr.mxu0 0.0
    %v386 = vand.u32 %v53, 4294901760
    %v387 = vsub.f32 %v53, %v386
    %v388 = vand.u32 %v387, 4294901760
    %389 = vmatpush1.xpose.msra.mxu0 %v388
    %390 = vmatprep.subr.mxu0 0.0
    %391 = vmatpush2.xpose.msra.mxu0 0.0
    %392 = vmatprep.subr.mxu0 0.0
    %393 = vmatpush2.xpose.msra.mxu0 0.0
    %394 = vmatprep.subr.mxu0 0.0
    %395 = vmatpush2.xpose.msra.mxu0 0.0
    %396 = vmatprep.subr.mxu0 0.0
    %397 = vmatpush2.xpose.msra.mxu0 0.0
    %398 = vmatprep.subr.mxu0 0.0
    %399 = vmatpush2.xpose.msra.mxu0 0.0
    %400 = vmatprep.subr.mxu0 0.0
    %401 = vmatpush2.xpose.msra.mxu0 0.0
    %402 = vmatprep.subr.mxu0 0.0
    %403 = vmatpush2.xpose.msra.mxu0 0.0
    %404 = vmatprep.subr.mxu0 0.0
    %405 = vmatpush2.xpose.msra.mxu0 0.0
    %406 = vmatprep.subr.mxu0 0.0
    %407 = vmatpush2.xpose.msra.mxu0 0.0
    %408 = vmatprep.subr.mxu0 0.0
    %409 = vmatpush2.xpose.msra.mxu0 0.0
    %410 = vmatprep.subr.mxu0 0.0
    %411 = vmatpush2.xpose.msra.mxu0 0.0
    %412 = vmatprep.subr.mxu0 0.0
    %413 = vmatpush2.xpose.msra.mxu0 0.0
    %414 = vmatprep.subr.mxu0 0.0
    %415 = vmatpush2.xpose.msra.mxu0 0.0
    %416 = vmatprep.subr.mxu0 0.0
    %417 = vmatpush2.xpose.msra.mxu0 0.0
    %418 = vmatprep.subr.mxu0 0.0
    %419 = vmatpush2.xpose.msra.mxu0 0.0
    %420 = vmatprep.subr.mxu0 0.0
    %421 = vmatpush2.xpose.msra.mxu0 0.0
    %422 = vmatprep.mubr.f32.mxu0 0.0
    %v423 = vand.u32 %v50, 4294901760
    %424 = vmatmul.mubr.f32.gmra.mxu0 %v423
    %v425 = vpop.f32.mrf.mxu0
    %v426 = vadd.f32 %v352, %v425
    %v427 = vpop.f32.mrf.mxu0
    %428 = vdwg.mxu0
    %429 = vmatprep.subr.mxu0 0.0
    %430 = vmatpush1.xpose.msra.mxu0 0.0
    %431 = vmatprep.subr.mxu0 0.0
    %432 = vmatpush1.xpose.msra.mxu0 0.0
    %433 = vmatprep.subr.mxu0 0.0
    %434 = vmatpush1.xpose.msra.mxu0 0.0
    %435 = vmatprep.subr.mxu0 0.0
    %436 = vmatpush1.xpose.msra.mxu0 0.0
    %437 = vmatprep.subr.mxu0 0.0
    %438 = vmatpush1.xpose.msra.mxu0 0.0
    %439 = vmatprep.subr.mxu0 0.0
    %440 = vmatpush1.xpose.msra.mxu0 0.0
    %441 = vmatprep.subr.mxu0 0.0
    %442 = vmatpush1.xpose.msra.mxu0 0.0
    %443 = vmatprep.subr.mxu0 0.0
    %444 = vmatpush1.xpose.msra.mxu0 0.0
    %445 = vmatprep.subr.mxu0 0.0
    %446 = vmatpush1.xpose.msra.mxu0 0.0
    %447 = vmatprep.subr.mxu0 0.0
    %448 = vmatpush1.xpose.msra.mxu0 0.0
    %449 = vmatprep.subr.mxu0 0.0
    %450 = vmatpush1.xpose.msra.mxu0 0.0
    %451 = vmatprep.subr.mxu0 0.0
    %452 = vmatpush1.xpose.msra.mxu0 0.0
    %453 = vmatprep.subr.mxu0 0.0
    %454 = vmatpush1.xpose.msra.mxu0 0.0
    %455 = vmatprep.subr.mxu0 0.0
    %456 = vmatpush1.xpose.msra.mxu0 0.0
    %457 = vmatprep.subr.mxu0 0.0
    %458 = vmatpush1.xpose.msra.mxu0 0.0
    %459 = vmatprep.subr.mxu0 0.0
    %v460 = vand.u32 %v53, 4294901760
    %461 = vmatpush1.xpose.msra.mxu0 %v460
    %462 = vmatprep.subr.mxu0 0.0
    %463 = vmatpush2.xpose.msra.mxu0 0.0
    %464 = vmatprep.subr.mxu0 0.0
    %465 = vmatpush2.xpose.msra.mxu0 0.0
    %466 = vmatprep.subr.mxu0 0.0
    %467 = vmatpush2.xpose.msra.mxu0 0.0
    %468 = vmatprep.subr.mxu0 0.0
    %469 = vmatpush2.xpose.msra.mxu0 0.0
    %470 = vmatprep.subr.mxu0 0.0
    %471 = vmatpush2.xpose.msra.mxu0 0.0
    %472 = vmatprep.subr.mxu0 0.0
    %473 = vmatpush2.xpose.msra.mxu0 0.0
    %474 = vmatprep.subr.mxu0 0.0
    %475 = vmatpush2.xpose.msra.mxu0 0.0
    %476 = vmatprep.subr.mxu0 0.0
    %477 = vmatpush2.xpose.msra.mxu0 0.0
    %478 = vmatprep.subr.mxu0 0.0
    %479 = vmatpush2.xpose.msra.mxu0 0.0
    %480 = vmatprep.subr.mxu0 0.0
    %481 = vmatpush2.xpose.msra.mxu0 0.0
    %482 = vmatprep.subr.mxu0 0.0
    %483 = vmatpush2.xpose.msra.mxu0 0.0
    %484 = vmatprep.subr.mxu0 0.0
    %485 = vmatpush2.xpose.msra.mxu0 0.0
    %486 = vmatprep.subr.mxu0 0.0
    %487 = vmatpush2.xpose.msra.mxu0 0.0
    %488 = vmatprep.subr.mxu0 0.0
    %489 = vmatpush2.xpose.msra.mxu0 0.0
    %490 = vmatprep.subr.mxu0 0.0
    %491 = vmatpush2.xpose.msra.mxu0 0.0
    %492 = vmatprep.subr.mxu0 0.0
    %493 = vmatpush2.xpose.msra.mxu0 0.0
    %494 = vmatprep.mubr.f32.mxu0 0.0
    %v495 = vand.u32 %v50, 4294901760
    %496 = vmatmul.mubr.f32.gmra.mxu0 %v495
    %v497 = vpop.f32.mrf.mxu0
    %v498 = vadd.f32 %v426, %v497
    %v499 = vpop.f32.mrf.mxu0
    %500 = vdwg.mxu0
    %v501 = vadd.f32 %v45, %v498
    %vm502 = vcmask 58368
    %503 = vst.msk [vmem:[#allocation2] sm:$0x3] %vm502, %v501
    // Predicated region
    $region26: #{tpu_custom_call.1} parent=1 // pred_check
      %p504 = pneg %p39
    $region27: #{tpu_custom_call.1} parent=1 // pred_check_branch
      %506 = sbr.rel (%p504) target = $region29
    $region28: #{tpu_custom_call.1} parent=1 // pred_region
      %v507 = vld [vmem:[#allocation2] sm:$0x3]
      %v508 = vld [vmem:[%s2] sm:$0x1]
      %v510 = vlaneseq
      %v511 = vshrl.u32 %v510, 7
      %v512 = vsub.s32 0, %v511
      %v513 = vrot.slane %v508, %v512
      %v515 = vadd.f32 %v507, %v513
      %516 = vst.msk [vmem:[#allocation8] sm:$0x3] %vm502, %v515
    $region29: #{tpu_custom_call.1} parent=1 // pred_fallthru
      _
    // Predicated region
    $region30: #{tpu_custom_call.1} parent=1 // pred_check
      _
    $region31: #{tpu_custom_call.1} parent=1 // pred_check_branch
      %518 = sbr.rel (0) target = $region33
    $region32: #{tpu_custom_call.1} parent=1 // pred_region
      %s520 = ssub.s32 32, 32
      %521 = vsyncadd [#allocation5], %s520
      %s523 = sshll.u32 [#allocation8], 4
      %s524 = int_to_ptr.vmem [resolvable:$true] %s523
      %526 = dma.vmem_to_hbm [thread:$0]  %s524, 32, %s3, [#allocation5]
    $region33: #{tpu_custom_call.1} parent=1 // pred_fallthru
      _
    // Predicated region
    $region34: #{tpu_custom_call.1} parent=1 // pred_check
      _
    $region35: #{tpu_custom_call.1} parent=1 // pred_check_branch
      %528 = sbr.rel (0) target = $region37
    $region36: #{tpu_custom_call.1} parent=1 // pred_region
      %529 = dma.done [#allocation5], 32
    $region37: #{tpu_custom_call.1} parent=1 // pred_fallthru
      _
    %530 = vsyncpa [#allocation4], 1
    %531 = vsyncpa [#allocation7], 1
    %532 = vsyncpa [#allocation5], 1

</llo_original>
